<compile_context>
chip_gen: v7x
topology: tpu7x:2x2x1
jax: 0.10.0
libtpu: 0.0.40
codegen_flags: <defaults>
</compile_context>

<pallas_src>
import functools

import jax
import jax.numpy as jnp
from jax import lax
from jax.experimental import pallas as pl
from jax.experimental.pallas import tpu as pltpu


def _abs_pow(x, p):
    """|x|**p for static p (p==2 avoids abs; p==1 avoids pow)."""
    if p == 2:
        return x * x
    if p == 1:
        return jnp.abs(x)
    return jnp.power(jnp.abs(x), float(p))


def _root(x, p):
    if p == 2:
        return jnp.sqrt(x)
    if p == 1:
        return x
    return jnp.power(x, 1.0 / float(p))


def _pose_loss_kernel(est_ref, gt_ref, out_ref, *, p):
    est = est_ref[...]            # (tile_n, 7) f32: 3 translation + 4 quat
    gt = gt_ref[...]              # (tile_n, 7) f32
    tile_n = est.shape[0]

    # Channel masks (translation = channels 0..2, quaternion = 3..6).  Masked
    # full-width ops keep everything on whole vregs (no lane slices/rotates);
    # the 7 channels share one lane-group per vreg anyway.
    ch = lax.broadcasted_iota(jnp.int32, (tile_n, 7), 1)
    mask_x = ch < 3
    mask_q = ch >= 3
    zero = jnp.zeros_like(est)

    # ---- translation term: per-pose || gt_x - est_x ||_p -------------------
    d = gt - est
    sx = jnp.sum(jnp.where(mask_x, _abs_pow(d, p), zero), axis=1, keepdims=True)
    l_x = _root(sx, p)                                   # (tile_n, 1)

    # ---- orientation term: L2-normalize quaternions, then p-norm of diff ---
    se = jnp.sum(jnp.where(mask_q, est * est, zero), axis=1, keepdims=True)
    sg = jnp.sum(jnp.where(mask_q, gt * gt, zero), axis=1, keepdims=True)
    # q / max(||q||, 1e-12)  ==  q * rsqrt(max(||q||^2, 1e-24))  (EUP rsqrt,
    # matches F.normalize(eps=1e-12) in fp32 for non-degenerate inputs).
    inv_e = lax.rsqrt(jnp.maximum(se, 1e-24))
    inv_g = lax.rsqrt(jnp.maximum(sg, 1e-24))
    dq = gt * inv_g - est * inv_e
    sq = jnp.sum(jnp.where(mask_q, _abs_pow(dq, p), zero), axis=1, keepdims=True)
    l_q = _root(sq, p)                                   # (tile_n, 1)

    # Per-pose (l_x, l_q) pair.  Column-select via broadcast avoids a lane
    # concat / offset store.
    col = lax.broadcasted_iota(jnp.int32, (tile_n, 2), 1)
    out_ref[...] = jnp.where(col == 0, l_x, l_q)


_MAX_TILE_N = 2048   # rows per grid step; ~6 MiB double-buffered VMEM total.


def _pose_loss_forward(est_pose, gt_pose, s_x, s_q, *, p, learnable):
    est_pose = est_pose.astype(jnp.float32)
    gt_pose = gt_pose.astype(jnp.float32)
    n = est_pose.shape[0]

    # Full-array block for small batches (always a legal block shape);
    # multiple-of-8 tiles with a partial last block for large batches.
    tile_n = n if n <= _MAX_TILE_N else _MAX_TILE_N
    grid = (pl.cdiv(n, tile_n),)

    per_pose = pl.pallas_call(
        functools.partial(_pose_loss_kernel, p=p),
        out_shape=jax.ShapeDtypeStruct((n, 2), jnp.float32),
        grid=grid,
        in_specs=[
            pl.BlockSpec((tile_n, 7), lambda i: (i, 0)),
            pl.BlockSpec((tile_n, 7), lambda i: (i, 0)),
        ],
        out_specs=pl.BlockSpec((tile_n, 2), lambda i: (i, 0)),
        compiler_params=pltpu.CompilerParams(
            dimension_semantics=("parallel",)),
    )(est_pose, gt_pose)

    l_x = jnp.mean(per_pose[:, 0])
    l_q = jnp.mean(per_pose[:, 1])
    if learnable:
        return l_x * jnp.exp(-s_x) + s_x + l_q * jnp.exp(-s_q) + s_q
    return s_x * l_x + s_q * l_q


class CameraPoseLoss:
    """JAX/Pallas re-implementation of the PyTorch CameraPoseLoss forward."""

    def __init__(self, config):
        self.learnable = bool(config.get("learnable"))
        self.norm = int(config.get("norm"))
        # torch keeps s_x/s_q as (1,) Parameters; forward only needs values.
        self.s_x = jnp.float32(config.get("s_x"))
        self.s_q = jnp.float32(config.get("s_q"))
        self._forward = jax.jit(
            functools.partial(
                _pose_loss_forward, p=self.norm, learnable=self.learnable))

    def __call__(self, est_pose, gt_pose):
        est_pose = jnp.asarray(est_pose)
        gt_pose = jnp.asarray(gt_pose)
        return self._forward(est_pose, gt_pose, self.s_x, self.s_q)


def _reference_loss(est_pose, gt_pose, config):
    """Pure-JAX reference matching the PyTorch forward."""
    p = float(config["norm"])
    s_x = jnp.float32(config["s_x"])
    s_q = jnp.float32(config["s_q"])

    def lp(d):
        return jnp.power(jnp.sum(jnp.abs(d) ** p, axis=1), 1.0 / p)

    def l2n(q):
        return q / jnp.maximum(
            jnp.linalg.norm(q, axis=1, keepdims=True), 1e-12)

    l_x = jnp.mean(lp(gt_pose[:, 0:3] - est_pose[:, 0:3]))
    l_q = jnp.mean(lp(l2n(gt_pose[:, 3:]) - l2n(est_pose[:, 3:])))
    if config["learnable"]:
        return l_x * jnp.exp(-s_x) + s_x + l_q * jnp.exp(-s_q) + s_q
    return s_x * l_x + s_q * l_q


if __name__ == "__main__":
    key = jax.random.PRNGKey(0)
    k1, k2, k3, k4 = jax.random.split(key, 4)

    # Small demo batch: 8 poses of 7 values (3 translation + 4 quaternion).
    N, POSE_DIM = 8, 7
    est_pose = jax.random.normal(k1, (N, POSE_DIM), dtype=jnp.float32)
    gt_pose = jax.random.normal(k2, (N, POSE_DIM), dtype=jnp.float32)

    configs = (
        {"learnable": False, "s_x": 1.0, "s_q": 1.0, "norm": 2},
        {"learnable": True, "s_x": 0.0, "s_q": -3.0, "norm": 2},
        {"learnable": False, "s_x": 1.0, "s_q": 0.5, "norm": 1},
    )
    for cfg in configs:
        loss_mod = CameraPoseLoss(cfg)
        out = jax.block_until_ready(loss_mod(est_pose, gt_pose))
        ref = jax.block_until_ready(_reference_loss(est_pose, gt_pose, cfg))
        if not jnp.allclose(out, ref, rtol=1e-5, atol=1e-5):
            raise AssertionError(f"mismatch: pallas={out} ref={ref} cfg={cfg}")

    # Exercise the tiled path (multi-block grid + partial last block) once.
    N_big = 2500
    est_big = jax.random.normal(k3, (N_big, POSE_DIM), dtype=jnp.float32)
    gt_big = jax.random.normal(k4, (N_big, POSE_DIM), dtype=jnp.float32)
    cfg = {"learnable": True, "s_x": 0.5, "s_q": -1.0, "norm": 2}
    loss_mod = CameraPoseLoss(cfg)
    out = jax.block_until_ready(loss_mod(est_big, gt_big))
    ref = jax.block_until_ready(_reference_loss(est_big, gt_big, cfg))
    if not jnp.allclose(out, ref, rtol=1e-5, atol=1e-5):
        raise AssertionError(f"mismatch (tiled): pallas={out} ref={ref}")

    print("KERNEL_OK")
</pallas_src>

<mosaic_0001>
module attributes {stable_mosaic.version = 11 : i64} {
  func.func @_pose_loss_kernel(%arg0: i32, %arg1: memref<8x7xf32, #tpu.memory_space<vmem>>, %arg2: memref<8x7xf32, #tpu.memory_space<vmem>>, %arg3: memref<8x2xf32, #tpu.memory_space<vmem>>) attributes {dimension_semantics = [#tpu.dimension_semantics<parallel>], iteration_bounds = array<i64: 1>, scalar_prefetch = 0 : i64, scratch_operands = 0 : i64, tpu.core_type = #tpu.core_type<tc>, window_params = [{transform_indices = @transform_0, window_bounds = array<i64: 8, 7>}, {transform_indices = @transform_1, window_bounds = array<i64: 8, 7>}, {transform_indices = @transform_2, window_bounds = array<i64: 8, 2>}]} {
    %c0 = arith.constant 0 : index
    %c0_0 = arith.constant 0 : index
    %0 = vector.load %arg1[%c0, %c0_0] : memref<8x7xf32, #tpu.memory_space<vmem>>, vector<8x7xf32>
    %c0_1 = arith.constant 0 : index
    %c0_2 = arith.constant 0 : index
    %1 = vector.load %arg2[%c0_1, %c0_2] : memref<8x7xf32, #tpu.memory_space<vmem>>, vector<8x7xf32>
    %2 = tpu.iota {dimensions = array<i32: 1>} : vector<8x7xi32>
    %c3_i32 = arith.constant 3 : i32
    %3 = vector.broadcast %c3_i32 : i32 to vector<8x7xi32>
    %4 = arith.cmpi slt, %2, %3 : vector<8x7xi32>
    %c3_i32_3 = arith.constant 3 : i32
    %5 = vector.broadcast %c3_i32_3 : i32 to vector<8x7xi32>
    %6 = arith.cmpi sge, %2, %5 : vector<8x7xi32>
    %cst = arith.constant 0.000000e+00 : f32
    %7 = vector.broadcast %cst : f32 to vector<8x7xf32>
    %8 = arith.subf %1, %0 : vector<8x7xf32>
    %9 = arith.mulf %8, %8 : vector<8x7xf32>
    %10 = arith.select %4, %9, %7 : vector<8x7xi1>, vector<8x7xf32>
    %cst_4 = arith.constant dense<0.000000e+00> : vector<8xf32>
    %11 = vector.multi_reduction <add>, %10, %cst_4 [1] : vector<8x7xf32> to vector<8xf32>
    %12 = vector.shape_cast %11 : vector<8xf32> to vector<8x1xf32>
    %13 = math.sqrt %12 : vector<8x1xf32>
    %14 = arith.mulf %0, %0 : vector<8x7xf32>
    %15 = arith.select %6, %14, %7 : vector<8x7xi1>, vector<8x7xf32>
    %cst_5 = arith.constant dense<0.000000e+00> : vector<8xf32>
    %16 = vector.multi_reduction <add>, %15, %cst_5 [1] : vector<8x7xf32> to vector<8xf32>
    %17 = vector.shape_cast %16 : vector<8xf32> to vector<8x1xf32>
    %18 = arith.mulf %1, %1 : vector<8x7xf32>
    %19 = arith.select %6, %18, %7 : vector<8x7xi1>, vector<8x7xf32>
    %cst_6 = arith.constant dense<0.000000e+00> : vector<8xf32>
    %20 = vector.multi_reduction <add>, %19, %cst_6 [1] : vector<8x7xf32> to vector<8xf32>
    %21 = vector.shape_cast %20 : vector<8xf32> to vector<8x1xf32>
    %cst_7 = arith.constant 1.000000e-24 : f32
    %22 = vector.broadcast %cst_7 : f32 to vector<8x1xf32>
    %23 = arith.maximumf %17, %22 : vector<8x1xf32>
    %24 = math.rsqrt %23 : vector<8x1xf32>
    %cst_8 = arith.constant 1.000000e-24 : f32
    %25 = vector.broadcast %cst_8 : f32 to vector<8x1xf32>
    %26 = arith.maximumf %21, %25 : vector<8x1xf32>
    %27 = math.rsqrt %26 : vector<8x1xf32>
    %28 = vector.broadcast %27 : vector<8x1xf32> to vector<8x7xf32>
    %29 = arith.mulf %1, %28 : vector<8x7xf32>
    %30 = vector.broadcast %24 : vector<8x1xf32> to vector<8x7xf32>
    %31 = arith.mulf %0, %30 : vector<8x7xf32>
    %32 = arith.subf %29, %31 : vector<8x7xf32>
    %33 = arith.mulf %32, %32 : vector<8x7xf32>
    %34 = arith.select %6, %33, %7 : vector<8x7xi1>, vector<8x7xf32>
    %cst_9 = arith.constant dense<0.000000e+00> : vector<8xf32>
    %35 = vector.multi_reduction <add>, %34, %cst_9 [1] : vector<8x7xf32> to vector<8xf32>
    %36 = vector.shape_cast %35 : vector<8xf32> to vector<8x1xf32>
    %37 = math.sqrt %36 : vector<8x1xf32>
    %38 = tpu.iota {dimensions = array<i32: 1>} : vector<8x2xi32>
    %c0_i32 = arith.constant 0 : i32
    %39 = vector.broadcast %c0_i32 : i32 to vector<8x2xi32>
    %40 = arith.cmpi eq, %38, %39 : vector<8x2xi32>
    %41 = vector.shape_cast %13 : vector<8x1xf32> to vector<8x1xf32>
    %42 = vector.broadcast %41 : vector<8x1xf32> to vector<8x2xf32>
    %43 = vector.shape_cast %37 : vector<8x1xf32> to vector<8x1xf32>
    %44 = vector.broadcast %43 : vector<8x1xf32> to vector<8x2xf32>
    %45 = arith.select %40, %42, %44 : vector<8x2xi1>, vector<8x2xf32>
    %c0_10 = arith.constant 0 : index
    %c0_11 = arith.constant 0 : index
    %46 = vector.load %arg3[%c0_10, %c0_11] : memref<8x2xf32, #tpu.memory_space<vmem>>, vector<8x2xf32>
    tpu.vector_store %arg3[%c0_10, %c0_11], %45 {strides = array<i32>} : memref<8x2xf32, #tpu.memory_space<vmem>>, vector<8x2xf32>,
    return
  }
  func.func @transform_0(%arg0: i32) -> (i32, i32) {
    %c0_i32 = arith.constant 0 : i32
    %c0_i32_0 = arith.constant 0 : i32
    return %arg0, %c0_i32 : i32, i32
  }
  func.func @transform_1(%arg0: i32) -> (i32, i32) {
    %c0_i32 = arith.constant 0 : i32
    %c0_i32_0 = arith.constant 0 : i32
    return %arg0, %c0_i32 : i32, i32
  }
  func.func @transform_2(%arg0: i32) -> (i32, i32) {
    %c0_i32 = arith.constant 0 : i32
    %c0_i32_0 = arith.constant 0 : i32
    return %arg0, %c0_i32 : i32, i32
  }
}

</mosaic_0001>

<llo_original>
// kernel: _pose_loss_forward.1
$region0: #{_pose_loss_forward.1}
  #allocation0 [shape = 'u32[]', space=smem, size = 0x4, offset = 0x4, fixed_abs, tag = 'smem constant byte address 0x4 - core index']
  #allocation1 [shape = 'u32[144,128]{1,0:T(1,128)}', space=vmem, size = 0x12000, scoped, tag = 'internal scratch']
  %s0 = inlined_call_operand.vmem [shape: f32[8,7], index: 0, kind: input, shape index: {}]
  %s1 = inlined_call_operand.hbm [shape: f32[8,7], index: 1, kind: input, shape index: {}]
  %s2 = inlined_call_operand.vmem [shape: f32[8,2], index: 2, kind: output, shape index: {}]
  %s3 = sld [smem:[#allocation0]]
  $region22: #{_pose_loss_forward.1} parent=0
    _
  %s5 = ssub.s32 1, %s3
  %s6 = scalar_select 0, %s5, %s3
  $region1: #{_pose_loss_forward.1} parent=0
    #allocation2 [shape = 'u8[4096]{0}', space=vmem, size = 0x1000, scoped, tag = 'input window, operand 1, single buffered']
    #allocation3 [shape = 's32[1]{0}', space=sflag, size = 0x4, scoped, tag = 'scoped memory for _pose_loss_forward.1']
    %7 = vsyncpa [#allocation3], 0
    // Predicated region
    $region2: #{_pose_loss_forward.1} parent=1 // pred_check
      _
    $region3: #{_pose_loss_forward.1} parent=1 // pred_check_branch
      %9 = sbr.rel (0) target = $region5
    $region4: #{_pose_loss_forward.1} parent=1 // pred_region
      _
    $region5: #{_pose_loss_forward.1} parent=1 // pred_fallthru
      _
    // Predicated region
    $region6: #{_pose_loss_forward.1} parent=1 // pred_check
      _
    $region7: #{_pose_loss_forward.1} parent=1 // pred_check_branch
      %11 = sbr.rel (0) target = $region9
    $region8: #{_pose_loss_forward.1} parent=1 // pred_region
      %s13 = ssub.s32 128, 128
      %14 = vsyncadd [#allocation3], %s13
      %s16 = sshll.u32 [#allocation2], 4
      %s17 = int_to_ptr.vmem [resolvable:$true] %s16
      %19 = dma.hbm_to_vmem [thread:$0]  %s1, 128, %s17, [#allocation3]
    $region9: #{_pose_loss_forward.1} parent=1 // pred_fallthru
      _
    // Predicated region
    $region10: #{_pose_loss_forward.1} parent=1 // pred_check
      _
    $region11: #{_pose_loss_forward.1} parent=1 // pred_check_branch
      %21 = sbr.rel (0) target = $region13
    $region12: #{_pose_loss_forward.1} parent=1 // pred_region
      %22 = dma.done [#allocation3], 128
    $region13: #{_pose_loss_forward.1} parent=1 // pred_fallthru
      _
    %v23 = vld [vmem:[%s0] sm:$0xff]
    %v24 = vld [vmem:[#allocation2] sm:$0xff]
    %v25 = vlaneseq
    %v26 = vand.u32 %v25, 127
    %vm27 = vcmp.lt.s32.totalorder %v26, 3
    %vm28 = vcmp.ge.s32.totalorder %v26, 3
    %v29 = vsub.f32 %v24, %v23
    %v30 = vmul.f32 %v29, %v29
    %v31 = vsel %vm27, %v30, 0.0
    %vm32 = vcmask 56320
    %v33 = vsel %vm32, %v31, 0.0
    %34 = vadd.xlane.f32.xlu0 %v33
    %v35 = vpop.xlane.xlu0 %34
    %v36 = vrsqrt.pop %v35
    %v37 = vmul.f32 %v35, %v36
    %vm38 = vcmp.eq.f32.partialorder %v35, inf
    %v39 = vsel %vm38, %v35, %v37
    %vm40 = vcmp.eq.f32.partialorder %v35, 0.0
    %v41 = vand.u32 %v35, 2147483648
    %v42 = vsel %vm40, %v41, %v39
    %v43 = vmul.f32 %v23, %v23
    %v44 = vsel %vm28, %v43, 0.0
    %v45 = vsel %vm32, %v44, 0.0
    %46 = vadd.xlane.f32.xlu0 %v45
    %v47 = vpop.xlane.xlu0 %46
    %v48 = vmul.f32 %v24, %v24
    %v49 = vsel %vm28, %v48, 0.0
    %v50 = vsel %vm32, %v49, 0.0
    %51 = vadd.xlane.f32.xlu0 %v50
    %v52 = vpop.xlane.xlu0 %51
    %v53 = vmax.f32 %v47, 1e-24
    %v54 = vrsqrt.pop %v53
    %v55 = vmax.f32 %v52, 1e-24
    %v56 = vrsqrt.pop %v55
    %v57 = vmul.f32 %v24, %v56
    %v58 = vmul.f32 %v23, %v54
    %v59 = vsub.f32 %v57, %v58
    %v60 = vmul.f32 %v59, %v59
    %v61 = vsel %vm28, %v60, 0.0
    %v62 = vsel %vm32, %v61, 0.0
    %63 = vadd.xlane.f32.xlu0 %v62
    %v64 = vpop.xlane.xlu0 %63
    %v65 = vrsqrt.pop %v64
    %v66 = vmul.f32 %v64, %v65
    %vm67 = vcmp.eq.f32.partialorder %v64, inf
    %v68 = vsel %vm67, %v64, %v66
    %vm69 = vcmp.eq.f32.partialorder %v64, 0.0
    %v70 = vand.u32 %v64, 2147483648
    %v71 = vsel %vm69, %v70, %v68
    %vm72 = vcmp.eq.s32.totalorder %v26, 0
    %v73 = vsel %vm72, %v42, %v71
    %vm74 = vcmask 15360
    %75 = vst.msk [vmem:[%s2] sm:$0xff] %vm74, %v73
    // Predicated region
    $region14: #{_pose_loss_forward.1} parent=1 // pred_check
      _
    $region15: #{_pose_loss_forward.1} parent=1 // pred_check_branch
      %77 = sbr.rel (0) target = $region17
    $region16: #{_pose_loss_forward.1} parent=1 // pred_region
      _
    $region17: #{_pose_loss_forward.1} parent=1 // pred_fallthru
      _
    // Predicated region
    $region18: #{_pose_loss_forward.1} parent=1 // pred_check
      _
    $region19: #{_pose_loss_forward.1} parent=1 // pred_check_branch
      %79 = sbr.rel (0) target = $region21
    $region20: #{_pose_loss_forward.1} parent=1 // pred_region
      _
    $region21: #{_pose_loss_forward.1} parent=1 // pred_fallthru
      _
    %80 = vsyncpa [#allocation3], 1

</llo_original>
